<compile_context>
chip_gen: v7x
topology: tpu7x:2x2x1
jax: 0.10.0
libtpu: 0.0.40
codegen_flags: <defaults>
</compile_context>

<pallas_src>
import functools

import jax
import jax.numpy as jnp
from jax.experimental import pallas as pl
from jax.experimental.pallas import tpu as pltpu

STATE_DIM = 35    # 32 + 3 (ExcavatorEnv.observation_space)
ACTION_DIM = 3    # ExcavatorEnv.action_space
HIDDEN = 180

HID_PAD = 256     # 180 padded to a lane-friendly width (2 x 128 lanes)
OUT_PAD = 128     # 3 padded to one full lane group (lane-dense stores)
ONE_IDX = HIDDEN  # hidden lane reserved to carry the constant 1.0 multiplying the biases
IN_AUG = STATE_DIM + 1


def actor_kernel(x_ref, w1_ref, w2_ref, w3_ref, o_ref):
    dt = x_ref.dtype
    # Layer 1: Linear (+bias via ones column) + ReLU — MXU matmul, f32 accumulate.
    h1 = jnp.dot(x_ref[...], w1_ref[...], preferred_element_type=jnp.float32)
    h1 = jnp.maximum(h1, 0.0).astype(dt)
    # Layer 2: Linear (+bias via ones lane) + ReLU
    h2 = jnp.dot(h1, w2_ref[...], preferred_element_type=jnp.float32)
    h2 = jnp.maximum(h2, 0.0).astype(dt)
    # Layer 3: Linear (+bias via ones lane) + Tanh, lane-dense (128-wide) store
    out = jnp.dot(h2, w3_ref[...], preferred_element_type=jnp.float32)
    o_ref[...] = jnp.tanh(out).astype(o_ref.dtype)


def _round_up(n, m):
    return ((n + m - 1) // m) * m


def pack_params(params, dtype=jnp.float32):
    """Fold biases into zero-padded, MXU-friendly weight matrices (stored as (in, out))."""
    w1, b1, w2, b2, w3, b3 = params

    w1a = jnp.zeros((IN_AUG, HID_PAD), jnp.float32)
    w1a = w1a.at[:STATE_DIM, :HIDDEN].set(w1)
    w1a = w1a.at[STATE_DIM, :HIDDEN].set(b1.reshape(-1))
    w1a = w1a.at[STATE_DIM, ONE_IDX].set(1.0)      # creates the "ones" lane in h1

    w2a = jnp.zeros((HID_PAD, HID_PAD), jnp.float32)
    w2a = w2a.at[:HIDDEN, :HIDDEN].set(w2)
    w2a = w2a.at[ONE_IDX, :HIDDEN].set(b2.reshape(-1))
    w2a = w2a.at[ONE_IDX, ONE_IDX].set(1.0)        # keeps the "ones" lane alive in h2

    w3a = jnp.zeros((HID_PAD, OUT_PAD), jnp.float32)
    w3a = w3a.at[:HIDDEN, :ACTION_DIM].set(w3)
    w3a = w3a.at[ONE_IDX, :ACTION_DIM].set(b3.reshape(-1))

    return (w1a.astype(dtype), w2a.astype(dtype), w3a.astype(dtype))


@functools.partial(jax.jit, static_argnames=("tb",))
def actor_forward(x, packed, tb=256):
    """x: (B, STATE_DIM) float32 -> (B, ACTION_DIM) float32."""
    w1a, w2a, w3a = packed
    B = x.shape[0]
    tb = min(tb, _round_up(B, 8))          # batch tile, multiple of 8 sublanes
    b_pad = _round_up(B, tb)

    # Append the bias-carrying ones column and pad the batch to a tile multiple.
    x_aug = jnp.concatenate([x, jnp.ones((B, 1), x.dtype)], axis=1)
    if b_pad != B:
        x_aug = jnp.pad(x_aug, ((0, b_pad - B), (0, 0)))
    x_aug = x_aug.astype(w1a.dtype)

    grid = (b_pad // tb,)
    out = pl.pallas_call(
        actor_kernel,
        out_shape=jax.ShapeDtypeStruct((b_pad, OUT_PAD), jnp.float32),
        grid=grid,
        in_specs=[
            pl.BlockSpec((tb, IN_AUG), lambda i: (i, 0)),        # streamed batch tile
            pl.BlockSpec((IN_AUG, HID_PAD), lambda i: (0, 0)),   # VMEM-resident weights
            pl.BlockSpec((HID_PAD, HID_PAD), lambda i: (0, 0)),
            pl.BlockSpec((HID_PAD, OUT_PAD), lambda i: (0, 0)),
        ],
        out_specs=pl.BlockSpec((tb, OUT_PAD), lambda i: (i, 0)),
        compiler_params=pltpu.CompilerParams(
            dimension_semantics=("parallel",)),   # megacore split on v7x, no-op elsewhere
    )(x_aug, w1a, w2a, w3a)
    return out[:B, :ACTION_DIM]


def init_params(key):
    """PyTorch nn.Linear default init (U[-1/sqrt(fan_in), 1/sqrt(fan_in)]); W stored as (in, out)."""
    dims = [(STATE_DIM, HIDDEN), (HIDDEN, HIDDEN), (HIDDEN, ACTION_DIM)]
    params = []
    for fan_in, fan_out in dims:
        key, kw, kb = jax.random.split(key, 3)
        bound = 1.0 / jnp.sqrt(jnp.float32(fan_in))
        w = jax.random.uniform(kw, (fan_in, fan_out), jnp.float32, -bound, bound)
        b = jax.random.uniform(kb, (1, fan_out), jnp.float32, -bound, bound)
        params.extend([w, b])
    return tuple(params)


def reference_forward(x, params):
    w1, b1, w2, b2, w3, b3 = params
    hp = jax.lax.Precision.HIGHEST
    h1 = jnp.maximum(jnp.dot(x, w1, precision=hp) + b1, 0.0)
    h2 = jnp.maximum(jnp.dot(h1, w2, precision=hp) + b2, 0.0)
    return jnp.tanh(jnp.dot(h2, w3, precision=hp) + b3)


if __name__ == "__main__":
    key = jax.random.PRNGKey(0)
    k_params, k_x1, k_x2 = jax.random.split(key, 3)
    params = init_params(k_params)

    # f32 path (exact parity with the PyTorch module).
    packed_f32 = pack_params(params, jnp.float32)

    B = 8
    x = jax.random.normal(k_x1, (B, STATE_DIM), jnp.float32)
    out = jax.block_until_ready(actor_forward(x, packed_f32))
    ref = reference_forward(x, params)
    assert out.shape == (B, ACTION_DIM)
    assert jnp.allclose(out, ref, atol=5e-5, rtol=1e-4), "f32 mismatch vs reference"

    # Non-multiple-of-tile batch exercises the batch grid, padding and output slicing.
    B2 = 200
    x2 = jax.random.normal(k_x2, (B2, STATE_DIM), jnp.float32)
    out2 = jax.block_until_ready(actor_forward(x2, packed_f32, tb=128))
    ref2 = reference_forward(x2, params)
    assert out2.shape == (B2, ACTION_DIM)
    assert jnp.allclose(out2, ref2, atol=5e-5, rtol=1e-4), "tiled f32 mismatch vs reference"

    # Optional bf16 weight/activation path (v6e/v7x MXU fast path, f32 accumulation).
    packed_bf16 = pack_params(params, jnp.bfloat16)
    out_bf16 = jax.block_until_ready(actor_forward(x2, packed_bf16, tb=128))
    assert out_bf16.shape == (B2, ACTION_DIM)
    assert jnp.allclose(out_bf16, ref2, atol=8e-2), "bf16 path drifted too far"

    print("KERNEL_OK")
</pallas_src>

<mosaic_0001>
module attributes {stable_mosaic.version = 11 : i64} {
  func.func @actor_kernel(%arg0: i32, %arg1: memref<8x36xf32, #tpu.memory_space<vmem>>, %arg2: memref<36x256xf32, #tpu.memory_space<vmem>>, %arg3: memref<256x256xf32, #tpu.memory_space<vmem>>, %arg4: memref<256x128xf32, #tpu.memory_space<vmem>>, %arg5: memref<8x128xf32, #tpu.memory_space<vmem>>) attributes {dimension_semantics = [#tpu.dimension_semantics<parallel>], iteration_bounds = array<i64: 1>, scalar_prefetch = 0 : i64, scratch_operands = 0 : i64, tpu.core_type = #tpu.core_type<tc>, window_params = [{transform_indices = @transform_0, window_bounds = array<i64: 8, 36>}, {pipeline_mode = #tpu.pipeline_mode<synchronous>, transform_indices = @transform_1, window_bounds = array<i64: 36, 256>}, {pipeline_mode = #tpu.pipeline_mode<synchronous>, transform_indices = @transform_2, window_bounds = array<i64: 256, 256>}, {pipeline_mode = #tpu.pipeline_mode<synchronous>, transform_indices = @transform_3, window_bounds = array<i64: 256, 128>}, {transform_indices = @transform_4, window_bounds = array<i64: 8, 128>}]} {
    %c0 = arith.constant 0 : index
    %c0_0 = arith.constant 0 : index
    %0 = vector.load %arg1[%c0, %c0_0] : memref<8x36xf32, #tpu.memory_space<vmem>>, vector<8x36xf32>
    %c0_1 = arith.constant 0 : index
    %c0_2 = arith.constant 0 : index
    %1 = vector.load %arg2[%c0_1, %c0_2] : memref<36x256xf32, #tpu.memory_space<vmem>>, vector<36x256xf32>
    %cst = arith.constant dense<0.000000e+00> : vector<8x256xf32>
    %2 = tpu.matmul %0, %1, %cst {dimension_numbers = #tpu.dot_dimension_numbers<[1], [0], [0], [1], [0, 0, 1, 1], [], []>} : vector<8x36xf32>, vector<36x256xf32>, vector<8x256xf32> -> vector<8x256xf32>
    %cst_3 = arith.constant 0.000000e+00 : f32
    %3 = vector.broadcast %cst_3 : f32 to vector<8x256xf32>
    %4 = arith.maximumf %2, %3 : vector<8x256xf32>
    %c0_4 = arith.constant 0 : index
    %c0_5 = arith.constant 0 : index
    %5 = vector.load %arg3[%c0_4, %c0_5] : memref<256x256xf32, #tpu.memory_space<vmem>>, vector<256x256xf32>
    %cst_6 = arith.constant dense<0.000000e+00> : vector<8x256xf32>
    %6 = tpu.matmul %4, %5, %cst_6 {dimension_numbers = #tpu.dot_dimension_numbers<[1], [0], [0], [1], [0, 0, 1, 1], [], []>} : vector<8x256xf32>, vector<256x256xf32>, vector<8x256xf32> -> vector<8x256xf32>
    %cst_7 = arith.constant 0.000000e+00 : f32
    %7 = vector.broadcast %cst_7 : f32 to vector<8x256xf32>
    %8 = arith.maximumf %6, %7 : vector<8x256xf32>
    %c0_8 = arith.constant 0 : index
    %c0_9 = arith.constant 0 : index
    %9 = vector.load %arg4[%c0_8, %c0_9] : memref<256x128xf32, #tpu.memory_space<vmem>>, vector<256x128xf32>
    %cst_10 = arith.constant dense<0.000000e+00> : vector<8x128xf32>
    %10 = tpu.matmul %8, %9, %cst_10 {dimension_numbers = #tpu.dot_dimension_numbers<[1], [0], [0], [1], [0, 0, 1, 1], [], []>} : vector<8x256xf32>, vector<256x128xf32>, vector<8x128xf32> -> vector<8x128xf32>
    %11 = math.tanh %10 : vector<8x128xf32>
    %c0_11 = arith.constant 0 : index
    %c0_12 = arith.constant 0 : index
    %12 = vector.load %arg5[%c0_11, %c0_12] : memref<8x128xf32, #tpu.memory_space<vmem>>, vector<8x128xf32>
    tpu.vector_store %arg5[%c0_11, %c0_12], %11 {strides = array<i32>} : memref<8x128xf32, #tpu.memory_space<vmem>>, vector<8x128xf32>,
    return
  }
  func.func @transform_0(%arg0: i32) -> (i32, i32) {
    %c0_i32 = arith.constant 0 : i32
    %c0_i32_0 = arith.constant 0 : i32
    return %arg0, %c0_i32 : i32, i32
  }
  func.func @transform_1(%arg0: i32) -> (i32, i32) {
    %c0_i32 = arith.constant 0 : i32
    %c0_i32_0 = arith.constant 0 : i32
    %c0_i32_1 = arith.constant 0 : i32
    return %c0_i32, %c0_i32_0 : i32, i32
  }
  func.func @transform_2(%arg0: i32) -> (i32, i32) {
    %c0_i32 = arith.constant 0 : i32
    %c0_i32_0 = arith.constant 0 : i32
    %c0_i32_1 = arith.constant 0 : i32
    return %c0_i32, %c0_i32_0 : i32, i32
  }
  func.func @transform_3(%arg0: i32) -> (i32, i32) {
    %c0_i32 = arith.constant 0 : i32
    %c0_i32_0 = arith.constant 0 : i32
    %c0_i32_1 = arith.constant 0 : i32
    return %c0_i32, %c0_i32_0 : i32, i32
  }
  func.func @transform_4(%arg0: i32) -> (i32, i32) {
    %c0_i32 = arith.constant 0 : i32
    %c0_i32_0 = arith.constant 0 : i32
    return %arg0, %c0_i32 : i32, i32
  }
}

</mosaic_0001>

<llo_original>
// kernel: actor_forward.1
$region0: #{actor_forward.1}
  #allocation0 [shape = 'u32[]', space=smem, size = 0x4, offset = 0x4, fixed_abs, tag = 'smem constant byte address 0x4 - core index']
  #allocation1 [shape = 'u32[144,128]{1,0:T(1,128)}', space=vmem, size = 0x12000, scoped, tag = 'internal scratch']
  %s0 = inlined_call_operand.vmem [shape: f32[8,36], index: 0, kind: input, shape index: {}]
  %s1 = inlined_call_operand.hbm [shape: f32[36,256], index: 1, kind: input, shape index: {}]
  %s2 = inlined_call_operand.hbm [shape: f32[256,256], index: 2, kind: input, shape index: {}]
  %s3 = inlined_call_operand.hbm [shape: f32[256,128], index: 3, kind: input, shape index: {}]
  %s4 = inlined_call_operand.vmem [shape: f32[8,128], index: 4, kind: output, shape index: {}]
  %s5 = sld [smem:[#allocation0]]
  $region38: #{actor_forward.1} parent=0
    _
  %s7 = ssub.s32 1, %s5
  %s8 = scalar_select 0, %s7, %s5
  $region1: #{actor_forward.1} parent=0
    #allocation2 [shape = 'u8[40960]{0}', space=vmem, size = 0xa000, scoped, tag = 'input window, operand 1, single buffered']
    #allocation3 [shape = 's32[1]{0}', space=sflag, size = 0x4, scoped, tag = 'scoped memory for actor_forward.1']
    #allocation4 [shape = 'u8[262144]{0}', space=vmem, size = 0x40000, scoped, tag = 'input window, operand 2, single buffered']
    #allocation5 [shape = 's32[1]{0}', space=sflag, size = 0x4, scoped, tag = 'scoped memory for actor_forward.1']
    #allocation6 [shape = 'u8[131072]{0}', space=vmem, size = 0x20000, scoped, tag = 'input window, operand 3, single buffered']
    %9 = vsyncpa [#allocation3], 0
    %10 = vsyncpa [#allocation5], 0
    // Predicated region
    $region2: #{actor_forward.1} parent=1 // pred_check
      _
    $region3: #{actor_forward.1} parent=1 // pred_check_branch
      %12 = sbr.rel (0) target = $region5
    $region4: #{actor_forward.1} parent=1 // pred_region
      _
    $region5: #{actor_forward.1} parent=1 // pred_fallthru
      _
    // Predicated region
    $region6: #{actor_forward.1} parent=1 // pred_check
      _
    $region7: #{actor_forward.1} parent=1 // pred_check_branch
      %14 = sbr.rel (0) target = $region9
    $region8: #{actor_forward.1} parent=1 // pred_region
      %s16 = ssub.s32 1280, 1280
      %17 = vsyncadd [#allocation3], %s16
      %s18 = sshll.u32 [#allocation2], 4
      %s19 = int_to_ptr.vmem [resolvable:$true] %s18
      %24 = dma.hbm_to_vmem [thread:$0]  %s1, 1280, %s19, [#allocation3], 256, 256, 16
    $region9: #{actor_forward.1} parent=1 // pred_fallthru
      _
    // Predicated region
    $region10: #{actor_forward.1} parent=1 // pred_check
      _
    $region11: #{actor_forward.1} parent=1 // pred_check_branch
      %26 = sbr.rel (0) target = $region13
    $region12: #{actor_forward.1} parent=1 // pred_region
      %s28 = ssub.s32 8192, 8192
      %29 = vsyncadd [#allocation5], %s28
      %s30 = sshll.u32 [#allocation4], 4
      %s31 = int_to_ptr.vmem [resolvable:$true] %s30
      %36 = dma.hbm_to_vmem [thread:$0]  %s2, 8192, %s31, [#allocation5], 256, 256, 16
    $region13: #{actor_forward.1} parent=1 // pred_fallthru
      _
    // Predicated region
    $region14: #{actor_forward.1} parent=1 // pred_check
      _
    $region15: #{actor_forward.1} parent=1 // pred_check_branch
      %38 = sbr.rel (0) target = $region17
    $region16: #{actor_forward.1} parent=1 // pred_region
      %s40 = ssub.s32 4096, 4096
      %41 = vsyncadd [#allocation5], %s40
      %s42 = sshll.u32 [#allocation6], 4
      %s43 = int_to_ptr.vmem [resolvable:$true] %s42
      %48 = dma.hbm_to_vmem [thread:$0]  %s3, 4096, %s43, [#allocation5], 128, 128, 8
    $region17: #{actor_forward.1} parent=1 // pred_fallthru
      _
    // Predicated region
    $region18: #{actor_forward.1} parent=1 // pred_check
      _
    $region19: #{actor_forward.1} parent=1 // pred_check_branch
      %50 = sbr.rel (0) target = $region21
    $region20: #{actor_forward.1} parent=1 // pred_region
      %51 = dma.done [#allocation3], 1280
    $region21: #{actor_forward.1} parent=1 // pred_fallthru
      _
    // Predicated region
    $region22: #{actor_forward.1} parent=1 // pred_check
      _
    $region23: #{actor_forward.1} parent=1 // pred_check_branch
      %53 = sbr.rel (0) target = $region25
    $region24: #{actor_forward.1} parent=1 // pred_region
      %54 = dma.done [#allocation5], 8192
    $region25: #{actor_forward.1} parent=1 // pred_fallthru
      _
    // Predicated region
    $region26: #{actor_forward.1} parent=1 // pred_check
      _
    $region27: #{actor_forward.1} parent=1 // pred_check_branch
      %56 = sbr.rel (0) target = $region29
    $region28: #{actor_forward.1} parent=1 // pred_region
      %57 = dma.done [#allocation5], 4096
    $region29: #{actor_forward.1} parent=1 // pred_fallthru
      _
    %v58 = vld [vmem:[%s0] sm:$0xff]
    %v59 = vld [vmem:[#allocation2] sm:$0xff]
    %v60 = vld [vmem:[#allocation2 + $0x8] sm:$0xff]
    %v61 = vld [vmem:[#allocation2 + $0x10] sm:$0xff]
    %v62 = vld [vmem:[#allocation2 + $0x18] sm:$0xff]
    %v63 = vld [vmem:[#allocation2 + $0x20] sm:$0xff]
    %v64 = vld [vmem:[#allocation2 + $0x28] sm:$0xff]
    %v65 = vld [vmem:[#allocation2 + $0x30] sm:$0xff]
    %v66 = vld [vmem:[#allocation2 + $0x38] sm:$0xff]
    %v67 = vld [vmem:[#allocation2 + $0x40] sm:$0xf]
    %v68 = vld [vmem:[#allocation2 + $0x48] sm:$0xf]
    %vm69 = vcmask 293888
    %v71 = vsel %vm69, %v58, 0
    %vm73 = vcmask 1043456
    %v75 = vsel %vm73, %v67, 0
    %v78 = vsel %vm73, %v68, 0
    %80 = vmatprep.subr.mxu0 %v60
    %81 = vmatpush1.msra.mxu0 %v59
    %82 = vmatprep.subr.mxu0 %v62
    %83 = vmatpush1.msra.mxu0 %v61
    %84 = vmatprep.subr.mxu0 %v64
    %85 = vmatpush1.msra.mxu0 %v63
    %86 = vmatprep.subr.mxu0 %v66
    %87 = vmatpush1.msra.mxu0 %v65
    %88 = vmatprep.subr.mxu0 %v78
    %89 = vmatpush1.msra.mxu0 %v75
    %90 = vmatprep.subr.mxu0 0.0
    %91 = vmatpush1.msra.mxu0 0.0
    %92 = vmatprep.subr.mxu0 0.0
    %93 = vmatpush1.msra.mxu0 0.0
    %94 = vmatprep.subr.mxu0 0.0
    %95 = vmatpush1.msra.mxu0 0.0
    %96 = vmatprep.subr.mxu0 0.0
    %97 = vmatpush1.msra.mxu0 0.0
    %98 = vmatprep.subr.mxu0 0.0
    %99 = vmatpush1.msra.mxu0 0.0
    %100 = vmatprep.subr.mxu0 0.0
    %101 = vmatpush1.msra.mxu0 0.0
    %102 = vmatprep.subr.mxu0 0.0
    %103 = vmatpush1.msra.mxu0 0.0
    %104 = vmatprep.subr.mxu0 0.0
    %105 = vmatpush1.msra.mxu0 0.0
    %106 = vmatprep.subr.mxu0 0.0
    %107 = vmatpush1.msra.mxu0 0.0
    %108 = vmatprep.subr.mxu0 0.0
    %109 = vmatpush1.msra.mxu0 0.0
    %110 = vmatprep.subr.mxu0 0.0
    %111 = vmatpush1.msra.mxu0 0.0
    %112 = vmatprep.subr.mxu0 0.0
    %113 = vmatpush1.msra.mxu0 0.0
    %114 = vmatprep.subr.mxu0 0.0
    %115 = vmatpush1.msra.mxu0 0.0
    %116 = vmatprep.subr.mxu0 0.0
    %117 = vmatpush1.msra.mxu0 0.0
    %118 = vmatprep.subr.mxu0 0.0
    %119 = vmatpush1.msra.mxu0 0.0
    %120 = vmatprep.subr.mxu0 0.0
    %121 = vmatpush1.msra.mxu0 0.0
    %122 = vmatprep.subr.mxu0 0.0
    %123 = vmatpush1.msra.mxu0 0.0
    %124 = vmatprep.subr.mxu0 0.0
    %125 = vmatpush1.msra.mxu0 0.0
    %126 = vmatprep.subr.mxu0 0.0
    %127 = vmatpush1.msra.mxu0 0.0
    %128 = vmatprep.subr.mxu0 0.0
    %129 = vmatpush1.msra.mxu0 0.0
    %130 = vmatprep.subr.mxu0 0.0
    %131 = vmatpush1.msra.mxu0 0.0
    %132 = vmatprep.subr.mxu0 0.0
    %133 = vmatpush1.msra.mxu0 0.0
    %134 = vmatprep.subr.mxu0 0.0
    %135 = vmatpush1.msra.mxu0 0.0
    %136 = vmatprep.subr.mxu0 0.0
    %137 = vmatpush1.msra.mxu0 0.0
    %138 = vmatprep.subr.mxu0 0.0
    %139 = vmatpush1.msra.mxu0 0.0
    %140 = vmatprep.subr.mxu0 0.0
    %141 = vmatpush1.msra.mxu0 0.0
    %142 = vmatprep.subr.mxu0 0.0
    %143 = vmatpush1.msra.mxu0 0.0
    %144 = vmatprep.mubr.f32.mxu0 0.0
    %145 = vmatmul.mubr.f32.gmra.mrb[0].mxu0 %v71
    %v146 = vpop.f32.mrb[0].mxu0
    %v147 = vadd.f32 0.0, %v146
    %v148 = vpop.f32.mrb[0].mxu0
    %v149 = vadd.f32 0.0, %v148
    %150 = vdwg.mxu0
    %v151 = vmax.f32 %v147, 0.0
    %v152 = vmax.f32 %v149, 0.0
    %v153 = vld [vmem:[#allocation4] sm:$0xff]
    %v154 = vld [vmem:[#allocation4 + $0x8] sm:$0xff]
    %v155 = vld [vmem:[#allocation4 + $0x10] sm:$0xff]
    %v156 = vld [vmem:[#allocation4 + $0x18] sm:$0xff]
    %v157 = vld [vmem:[#allocation4 + $0x20] sm:$0xff]
    %v158 = vld [vmem:[#allocation4 + $0x28] sm:$0xff]
    %v159 = vld [vmem:[#allocation4 + $0x30] sm:$0xff]
    %v160 = vld [vmem:[#allocation4 + $0x38] sm:$0xff]
    %v161 = vld [vmem:[#allocation4 + $0x40] sm:$0xff]
    %v162 = vld [vmem:[#allocation4 + $0x48] sm:$0xff]
    %v163 = vld [vmem:[#allocation4 + $0x50] sm:$0xff]
    %v164 = vld [vmem:[#allocation4 + $0x58] sm:$0xff]
    %v165 = vld [vmem:[#allocation4 + $0x60] sm:$0xff]
    %v166 = vld [vmem:[#allocation4 + $0x68] sm:$0xff]
    %v167 = vld [vmem:[#allocation4 + $0x70] sm:$0xff]
    %v168 = vld [vmem:[#allocation4 + $0x78] sm:$0xff]
    %v169 = vld [vmem:[#allocation4 + $0x80] sm:$0xff]
    %v170 = vld [vmem:[#allocation4 + $0x88] sm:$0xff]
    %v171 = vld [vmem:[#allocation4 + $0x90] sm:$0xff]
    %v172 = vld [vmem:[#allocation4 + $0x98] sm:$0xff]
    %v173 = vld [vmem:[#allocation4 + $0xa0] sm:$0xff]
    %v174 = vld [vmem:[#allocation4 + $0xa8] sm:$0xff]
    %v175 = vld [vmem:[#allocation4 + $0xb0] sm:$0xff]
    %v176 = vld [vmem:[#allocation4 + $0xb8] sm:$0xff]
    %v177 = vld [vmem:[#allocation4 + $0xc0] sm:$0xff]
    %v178 = vld [vmem:[#allocation4 + $0xc8] sm:$0xff]
    %v179 = vld [vmem:[#allocation4 + $0xd0] sm:$0xff]
    %v180 = vld [vmem:[#allocation4 + $0xd8] sm:$0xff]
    %v181 = vld [vmem:[#allocation4 + $0xe0] sm:$0xff]
    %v182 = vld [vmem:[#allocation4 + $0xe8] sm:$0xff]
    %v183 = vld [vmem:[#allocation4 + $0xf0] sm:$0xff]
    %v184 = vld [vmem:[#allocation4 + $0xf8] sm:$0xff]
    %v185 = vld [vmem:[#allocation4 + $0x100] sm:$0xff]
    %v186 = vld [vmem:[#allocation4 + $0x108] sm:$0xff]
    %v187 = vld [vmem:[#allocation4 + $0x110] sm:$0xff]
    %v188 = vld [vmem:[#allocation4 + $0x118] sm:$0xff]
    %v189 = vld [vmem:[#allocation4 + $0x120] sm:$0xff]
    %v190 = vld [vmem:[#allocation4 + $0x128] sm:$0xff]
    %v191 = vld [vmem:[#allocation4 + $0x130] sm:$0xff]
    %v192 = vld [vmem:[#allocation4 + $0x138] sm:$0xff]
    %v193 = vld [vmem:[#allocation4 + $0x140] sm:$0xff]
    %v194 = vld [vmem:[#allocation4 + $0x148] sm:$0xff]
    %v195 = vld [vmem:[#allocation4 + $0x150] sm:$0xff]
    %v196 = vld [vmem:[#allocation4 + $0x158] sm:$0xff]
    %v197 = vld [vmem:[#allocation4 + $0x160] sm:$0xff]
    %v198 = vld [vmem:[#allocation4 + $0x168] sm:$0xff]
    %v199 = vld [vmem:[#allocation4 + $0x170] sm:$0xff]
    %v200 = vld [vmem:[#allocation4 + $0x178] sm:$0xff]
    %v201 = vld [vmem:[#allocation4 + $0x180] sm:$0xff]
    %v202 = vld [vmem:[#allocation4 + $0x188] sm:$0xff]
    %v203 = vld [vmem:[#allocation4 + $0x190] sm:$0xff]
    %v204 = vld [vmem:[#allocation4 + $0x198] sm:$0xff]
    %v205 = vld [vmem:[#allocation4 + $0x1a0] sm:$0xff]
    %v206 = vld [vmem:[#allocation4 + $0x1a8] sm:$0xff]
    %v207 = vld [vmem:[#allocation4 + $0x1b0] sm:$0xff]
    %v208 = vld [vmem:[#allocation4 + $0x1b8] sm:$0xff]
    %v209 = vld [vmem:[#allocation4 + $0x1c0] sm:$0xff]
    %v210 = vld [vmem:[#allocation4 + $0x1c8] sm:$0xff]
    %v211 = vld [vmem:[#allocation4 + $0x1d0] sm:$0xff]
    %v212 = vld [vmem:[#allocation4 + $0x1d8] sm:$0xff]
    %v213 = vld [vmem:[#allocation4 + $0x1e0] sm:$0xff]
    %v214 = vld [vmem:[#allocation4 + $0x1e8] sm:$0xff]
    %v215 = vld [vmem:[#allocation4 + $0x1f0] sm:$0xff]
    %v216 = vld [vmem:[#allocation4 + $0x1f8] sm:$0xff]
    %217 = vmatprep.subr.mxu0 %v154
    %218 = vmatpush1.msra.mxu0 %v153
    %219 = vmatprep.subr.mxu0 %v156
    %220 = vmatpush1.msra.mxu0 %v155
    %221 = vmatprep.subr.mxu0 %v158
    %222 = vmatpush1.msra.mxu0 %v157
    %223 = vmatprep.subr.mxu0 %v160
    %224 = vmatpush1.msra.mxu0 %v159
    %225 = vmatprep.subr.mxu0 %v162
    %226 = vmatpush1.msra.mxu0 %v161
    %227 = vmatprep.subr.mxu0 %v164
    %228 = vmatpush1.msra.mxu0 %v163
    %229 = vmatprep.subr.mxu0 %v166
    %230 = vmatpush1.msra.mxu0 %v165
    %231 = vmatprep.subr.mxu0 %v168
    %232 = vmatpush1.msra.mxu0 %v167
    %233 = vmatprep.subr.mxu0 %v170
    %234 = vmatpush1.msra.mxu0 %v169
    %235 = vmatprep.subr.mxu0 %v172
    %236 = vmatpush1.msra.mxu0 %v171
    %237 = vmatprep.subr.mxu0 %v174
    %238 = vmatpush1.msra.mxu0 %v173
    %239 = vmatprep.subr.mxu0 %v176
    %240 = vmatpush1.msra.mxu0 %v175
    %241 = vmatprep.subr.mxu0 %v178
    %242 = vmatpush1.msra.mxu0 %v177
    %243 = vmatprep.subr.mxu0 %v180
    %244 = vmatpush1.msra.mxu0 %v179
    %245 = vmatprep.subr.mxu0 %v182
    %246 = vmatpush1.msra.mxu0 %v181
    %247 = vmatprep.subr.mxu0 %v184
    %248 = vmatpush1.msra.mxu0 %v183
    %249 = vmatprep.subr.mxu0 %v186
    %250 = vmatpush1.msra.mxu0 %v185
    %251 = vmatprep.subr.mxu0 %v188
    %252 = vmatpush1.msra.mxu0 %v187
    %253 = vmatprep.subr.mxu0 %v190
    %254 = vmatpush1.msra.mxu0 %v189
    %255 = vmatprep.subr.mxu0 %v192
    %256 = vmatpush1.msra.mxu0 %v191
    %257 = vmatprep.subr.mxu0 %v194
    %258 = vmatpush1.msra.mxu0 %v193
    %259 = vmatprep.subr.mxu0 %v196
    %260 = vmatpush1.msra.mxu0 %v195
    %261 = vmatprep.subr.mxu0 %v198
    %262 = vmatpush1.msra.mxu0 %v197
    %263 = vmatprep.subr.mxu0 %v200
    %264 = vmatpush1.msra.mxu0 %v199
    %265 = vmatprep.subr.mxu0 %v202
    %266 = vmatpush1.msra.mxu0 %v201
    %267 = vmatprep.subr.mxu0 %v204
    %268 = vmatpush1.msra.mxu0 %v203
    %269 = vmatprep.subr.mxu0 %v206
    %270 = vmatpush1.msra.mxu0 %v205
    %271 = vmatprep.subr.mxu0 %v208
    %272 = vmatpush1.msra.mxu0 %v207
    %273 = vmatprep.subr.mxu0 %v210
    %274 = vmatpush1.msra.mxu0 %v209
    %275 = vmatprep.subr.mxu0 %v212
    %276 = vmatpush1.msra.mxu0 %v211
    %277 = vmatprep.subr.mxu0 %v214
    %278 = vmatpush1.msra.mxu0 %v213
    %279 = vmatprep.subr.mxu0 %v216
    %280 = vmatpush1.msra.mxu0 %v215
    %281 = vmatprep.mubr.f32.mxu0 %v152
    %282 = vmatmul.mubr.f32.gmra.mrb[0].mxu0 %v151
    %v283 = vpop.f32.mrb[0].mxu0
    %v284 = vadd.f32 0.0, %v283
    %v285 = vpop.f32.mrb[0].mxu0
    %v286 = vadd.f32 0.0, %v285
    %287 = vdwg.mxu0
    %v288 = vmax.f32 %v284, 0.0
    %v289 = vmax.f32 %v286, 0.0
    %v290 = vld [vmem:[#allocation6] sm:$0xff]
    %v291 = vld [vmem:[#allocation6 + $0x8] sm:$0xff]
    %v292 = vld [vmem:[#allocation6 + $0x10] sm:$0xff]
    %v293 = vld [vmem:[#allocation6 + $0x18] sm:$0xff]
    %v294 = vld [vmem:[#allocation6 + $0x20] sm:$0xff]
    %v295 = vld [vmem:[#allocation6 + $0x28] sm:$0xff]
    %v296 = vld [vmem:[#allocation6 + $0x30] sm:$0xff]
    %v297 = vld [vmem:[#allocation6 + $0x38] sm:$0xff]
    %v298 = vld [vmem:[#allocation6 + $0x40] sm:$0xff]
    %v299 = vld [vmem:[#allocation6 + $0x48] sm:$0xff]
    %v300 = vld [vmem:[#allocation6 + $0x50] sm:$0xff]
    %v301 = vld [vmem:[#allocation6 + $0x58] sm:$0xff]
    %v302 = vld [vmem:[#allocation6 + $0x60] sm:$0xff]
    %v303 = vld [vmem:[#allocation6 + $0x68] sm:$0xff]
    %v304 = vld [vmem:[#allocation6 + $0x70] sm:$0xff]
    %v305 = vld [vmem:[#allocation6 + $0x78] sm:$0xff]
    %v306 = vld [vmem:[#allocation6 + $0x80] sm:$0xff]
    %v307 = vld [vmem:[#allocation6 + $0x88] sm:$0xff]
    %v308 = vld [vmem:[#allocation6 + $0x90] sm:$0xff]
    %v309 = vld [vmem:[#allocation6 + $0x98] sm:$0xff]
    %v310 = vld [vmem:[#allocation6 + $0xa0] sm:$0xff]
    %v311 = vld [vmem:[#allocation6 + $0xa8] sm:$0xff]
    %v312 = vld [vmem:[#allocation6 + $0xb0] sm:$0xff]
    %v313 = vld [vmem:[#allocation6 + $0xb8] sm:$0xff]
    %v314 = vld [vmem:[#allocation6 + $0xc0] sm:$0xff]
    %v315 = vld [vmem:[#allocation6 + $0xc8] sm:$0xff]
    %v316 = vld [vmem:[#allocation6 + $0xd0] sm:$0xff]
    %v317 = vld [vmem:[#allocation6 + $0xd8] sm:$0xff]
    %v318 = vld [vmem:[#allocation6 + $0xe0] sm:$0xff]
    %v319 = vld [vmem:[#allocation6 + $0xe8] sm:$0xff]
    %v320 = vld [vmem:[#allocation6 + $0xf0] sm:$0xff]
    %v321 = vld [vmem:[#allocation6 + $0xf8] sm:$0xff]
    %322 = vmatprep.subr.mxu0 0.0
    %323 = vmatpush1.msra.mxu0 %v290
    %324 = vmatprep.subr.mxu0 0.0
    %325 = vmatpush1.msra.mxu0 %v291
    %326 = vmatprep.subr.mxu0 0.0
    %327 = vmatpush1.msra.mxu0 %v292
    %328 = vmatprep.subr.mxu0 0.0
    %329 = vmatpush1.msra.mxu0 %v293
    %330 = vmatprep.subr.mxu0 0.0
    %331 = vmatpush1.msra.mxu0 %v294
    %332 = vmatprep.subr.mxu0 0.0
    %333 = vmatpush1.msra.mxu0 %v295
    %334 = vmatprep.subr.mxu0 0.0
    %335 = vmatpush1.msra.mxu0 %v296
    %336 = vmatprep.subr.mxu0 0.0
    %337 = vmatpush1.msra.mxu0 %v297
    %338 = vmatprep.subr.mxu0 0.0
    %339 = vmatpush1.msra.mxu0 %v298
    %340 = vmatprep.subr.mxu0 0.0
    %341 = vmatpush1.msra.mxu0 %v299
    %342 = vmatprep.subr.mxu0 0.0
    %343 = vmatpush1.msra.mxu0 %v300
    %344 = vmatprep.subr.mxu0 0.0
    %345 = vmatpush1.msra.mxu0 %v301
    %346 = vmatprep.subr.mxu0 0.0
    %347 = vmatpush1.msra.mxu0 %v302
    %348 = vmatprep.subr.mxu0 0.0
    %349 = vmatpush1.msra.mxu0 %v303
    %350 = vmatprep.subr.mxu0 0.0
    %351 = vmatpush1.msra.mxu0 %v304
    %352 = vmatprep.subr.mxu0 0.0
    %353 = vmatpush1.msra.mxu0 %v305
    %354 = vmatprep.subr.mxu0 0.0
    %355 = vmatpush1.msra.mxu0 %v306
    %356 = vmatprep.subr.mxu0 0.0
    %357 = vmatpush1.msra.mxu0 %v307
    %358 = vmatprep.subr.mxu0 0.0
    %359 = vmatpush1.msra.mxu0 %v308
    %360 = vmatprep.subr.mxu0 0.0
    %361 = vmatpush1.msra.mxu0 %v309
    %362 = vmatprep.subr.mxu0 0.0
    %363 = vmatpush1.msra.mxu0 %v310
    %364 = vmatprep.subr.mxu0 0.0
    %365 = vmatpush1.msra.mxu0 %v311
    %366 = vmatprep.subr.mxu0 0.0
    %367 = vmatpush1.msra.mxu0 %v312
    %368 = vmatprep.subr.mxu0 0.0
    %369 = vmatpush1.msra.mxu0 %v313
    %370 = vmatprep.subr.mxu0 0.0
    %371 = vmatpush1.msra.mxu0 %v314
    %372 = vmatprep.subr.mxu0 0.0
    %373 = vmatpush1.msra.mxu0 %v315
    %374 = vmatprep.subr.mxu0 0.0
    %375 = vmatpush1.msra.mxu0 %v316
    %376 = vmatprep.subr.mxu0 0.0
    %377 = vmatpush1.msra.mxu0 %v317
    %378 = vmatprep.subr.mxu0 0.0
    %379 = vmatpush1.msra.mxu0 %v318
    %380 = vmatprep.subr.mxu0 0.0
    %381 = vmatpush1.msra.mxu0 %v319
    %382 = vmatprep.subr.mxu0 0.0
    %383 = vmatpush1.msra.mxu0 %v320
    %384 = vmatprep.subr.mxu0 0.0
    %385 = vmatpush1.msra.mxu0 %v321
    %386 = vmatprep.mubr.f32.mxu0 %v289
    %387 = vmatmul.mubr.f32.gmra.mrb[0].mxu0 %v288
    %v388 = vpop.f32.mrb[0].mxu0
    %v389 = vadd.f32 0.0, %v388
    %v390 = vpop.f32.mrb[0].mxu0
    %391 = vdwg.mxu0
    %v392 = vtanh.pop %v389
    %393 = vst [vmem:[%s4] sm:$0xff] %v392
    // Predicated region
    $region30: #{actor_forward.1} parent=1 // pred_check
      _
    $region31: #{actor_forward.1} parent=1 // pred_check_branch
      %395 = sbr.rel (0) target = $region33
    $region32: #{actor_forward.1} parent=1 // pred_region
      _
    $region33: #{actor_forward.1} parent=1 // pred_fallthru
      _
    // Predicated region
    $region34: #{actor_forward.1} parent=1 // pred_check
      _
    $region35: #{actor_forward.1} parent=1 // pred_check_branch
      %397 = sbr.rel (0) target = $region37
    $region36: #{actor_forward.1} parent=1 // pred_region
      _
    $region37: #{actor_forward.1} parent=1 // pred_fallthru
      _
    %398 = vsyncpa [#allocation3], 1
    %399 = vsyncpa [#allocation5], 1

</llo_original>
